<compile_context>
chip_gen: v6e
topology: v6e:2x2x1
jax: 0.10.0
libtpu: 0.0.40
codegen_flags: <defaults>
</compile_context>

<pallas_src>
import functools

import jax
import jax.numpy as jnp
from jax.experimental import pallas as pl
from jax.experimental.pallas import tpu as pltpu

WINDOW_SIZE = 31
SIGMA = 1.5
C1 = 0.01 ** 2
C2 = 0.03 ** 2


def gaussian_1d(window_size: int, sigma: float) -> jnp.ndarray:
    x = jnp.arange(window_size, dtype=jnp.float32)
    g = jnp.exp(-((x - window_size // 2) ** 2) / (2.0 * sigma ** 2))
    return g / jnp.sum(g)


def conv_matrix(n: int, g: jnp.ndarray, window_size: int) -> jnp.ndarray:
    """M such that (M @ x) is the 1-D 'same' zero-padded correlation of x with g."""
    pad = window_size // 2
    i = jnp.arange(n)[:, None]
    j = jnp.arange(n)[None, :]
    idx = j - i + pad
    valid = (idx >= 0) & (idx < window_size)
    vals = g[jnp.clip(idx, 0, window_size - 1)]
    return jnp.where(valid, vals, 0.0).astype(jnp.float32)


def _round_up(x: int, m: int) -> int:
    return -(-x // m) * m


def _vmem_limit_bytes() -> int:
    """Generation-aware scoped-VMEM limit (~half of physical per-core VMEM)."""
    phys = 0
    try:
        phys = int(getattr(pltpu.get_tpu_info(), "vmem_capacity_bytes", 0) or 0)
    except Exception:
        phys = 0
    if phys <= 0:
        phys = 64 * 1024 * 1024  # conservative default: v7x per-core VMEM
    return int(min(max(phys // 2, 32 * 1024 * 1024), 64 * 1024 * 1024))


# ----------------------------------------------------------------------------
# Path A: small planes.  One MXU matmul against the full 2-D blur operator
# B^T = kron(Mh, Mw)^T; all elementwise work is lane-dense on (tb, H*W).
# ----------------------------------------------------------------------------
def _ssim_kernel_fused(b_ref, x1_ref, x2_ref, o_ref, *, tb):
    # Clamp (x + 1) / 2 to [0, 1]; (tb, HW) is lane-dense (HW multiple of 128
    # for the common power-of-two planes).
    x1 = jnp.clip((x1_ref[...] + 1.0) * 0.5, 0.0, 1.0)
    x2 = jnp.clip((x2_ref[...] + 1.0) * 0.5, 0.0, 1.0)

    # Stack the five blur inputs of every plane in the block: (5*tb, HW).
    z = jnp.concatenate([x1, x2, x1 * x1, x2 * x2, x1 * x2], axis=0)

    # One matmul: K = N = HW, M = 5*tb.  No transpose, no inter-pass reshape.
    blur = jnp.dot(z, b_ref[...], preferred_element_type=jnp.float32)

    mu1 = blur[0 * tb:1 * tb]
    mu2 = blur[1 * tb:2 * tb]
    e11 = blur[2 * tb:3 * tb]
    e22 = blur[3 * tb:4 * tb]
    e12 = blur[4 * tb:5 * tb]

    mu1_sq = mu1 * mu1
    mu2_sq = mu2 * mu2
    mu12 = mu1 * mu2
    s1 = e11 - mu1_sq
    s2 = e22 - mu2_sq
    s12 = e12 - mu12

    num = (2.0 * mu12 + C1) * (2.0 * s12 + C2)
    den = (mu1_sq + mu2_sq + C1) * (s1 + s2 + C2)
    ssim = num / den                                   # (tb, HW)

    # Per-step partial sum over the plane axis; lane-dense (1, HW) store.
    o_ref[...] = jnp.sum(ssim, axis=0, keepdims=True)


# ----------------------------------------------------------------------------
# Path B: large planes.  Separable two-pass blur with block-diagonal plane
# packing so the MXU contraction dim is ~256 even when W or H < 256.
# ----------------------------------------------------------------------------
def _ssim_kernel_separable(aw_ref, ah_ref, x1_ref, x2_ref, o_ref, *,
                           tb, H, W, kw, kh):
    x1 = jnp.clip((x1_ref[...] + 1.0) * 0.5, 0.0, 1.0)   # (tb, H, W)
    x2 = jnp.clip((x2_ref[...] + 1.0) * 0.5, 0.0, 1.0)
    z = jnp.concatenate([x1, x2, x1 * x1, x2 * x2, x1 * x2], axis=0)  # (5tb,H,W)

    aw = aw_ref[...]   # (kw*W, kw*W) = kron(I_kw, Mw^T): packed W-pass blur
    ah = ah_ref[...]   # (kh*H, kh*H) = kron(I_kh, Mh^T): packed H-pass blur

    # Pass 1: blur along W; kw rows packed per MXU row -> K = kw*W.
    t = jnp.dot(z.reshape(5 * tb * H // kw, kw * W), aw,
                preferred_element_type=jnp.float32).reshape(5 * tb, H, W)

    # Pass 2: per-plane transpose, blur along H; kh rows packed -> K = kh*H.
    tt = jnp.transpose(t, (0, 2, 1)).reshape(5 * tb * W // kh, kh * H)
    b = jnp.dot(tt, ah, preferred_element_type=jnp.float32).reshape(5 * tb, W, H)

    mu1 = b[0 * tb:1 * tb]
    mu2 = b[1 * tb:2 * tb]
    e11 = b[2 * tb:3 * tb]
    e22 = b[3 * tb:4 * tb]
    e12 = b[4 * tb:5 * tb]

    mu1_sq = mu1 * mu1
    mu2_sq = mu2 * mu2
    mu12 = mu1 * mu2
    s1 = e11 - mu1_sq
    s2 = e22 - mu2_sq
    s12 = e12 - mu12

    num = (2.0 * mu12 + C1) * (2.0 * s12 + C2)
    den = (mu1_sq + mu2_sq + C1) * (s1 + s2 + C2)
    ssim = num / den                                   # (tb, W, H)

    # Plane-axis reduction only (pure VPU vreg adds).
    o_ref[...] = jnp.sum(ssim, axis=0)


def ssim_loss_pallas(img1: jnp.ndarray, img2: jnp.ndarray) -> jnp.ndarray:
    """img1, img2: (N, C, H, W) float32 in [-1, 1].  Returns scalar 1 - SSIM."""
    N, C, H, W = img1.shape
    P = N * C
    HW = H * W
    x1 = img1.astype(jnp.float32)
    x2 = img2.astype(jnp.float32)

    g = gaussian_1d(WINDOW_SIZE, SIGMA)
    mh = conv_matrix(H, g, WINDOW_SIZE)   # (H, H) blur along H (left-multiply)
    mw = conv_matrix(W, g, WINDOW_SIZE)   # (W, W) blur along W (left-multiply)

    limit = _vmem_limit_bytes()
    budget = limit - 4 * 1024 * 1024      # headroom for Mosaic internal scratch

    fused_fixed = 2 * HW * HW * 4         # double-buffered kron blur matrix
    use_fused = (HW <= 1024) and (fused_fixed <= budget // 2)

    if use_fused:
        # ---- Path A ---------------------------------------------------------
        per_plane = 32 * HW * 4           # 2 inputs x 2 bufs + ~24 f32 temps
        cap = max(8, ((budget - fused_fixed) // per_plane) // 8 * 8)
        # Target >= ~1024 stacked matmul rows (5*tb), tb a multiple of 8.
        tb = min(_round_up(P, 8), _round_up(pl.cdiv(1024, 5), 8), cap)
        G = pl.cdiv(P, tb)
        P_pad = G * tb

        x1f = x1.reshape(P, HW)
        x2f = x2.reshape(P, HW)
        if P_pad != P:
            x1f = jnp.pad(x1f, ((0, P_pad - P), (0, 0)))
            x2f = jnp.pad(x2f, ((0, P_pad - P), (0, 0)))

        # Full 2-D blur as a right-multiply: row-major vec(Mh @ X @ Mw^T)
        # == kron(Mh, Mw) @ vec(X), so blur(z) = z @ kron(Mh, Mw)^T.
        bt = jnp.kron(mh, mw).T           # (HW, HW)

        kernel = functools.partial(_ssim_kernel_fused, tb=tb)
        partials = pl.pallas_call(
            kernel,
            out_shape=jax.ShapeDtypeStruct((G, 1, HW), jnp.float32),
            grid_spec=pltpu.PrefetchScalarGridSpec(
                num_scalar_prefetch=0,
                grid=(G,),
                in_specs=[
                    # Constant blur matrix: constant index_map -> fetched once.
                    pl.BlockSpec((HW, HW), lambda i: (0, 0)),
                    pl.BlockSpec((tb, HW), lambda i: (i, 0)),
                    pl.BlockSpec((tb, HW), lambda i: (i, 0)),
                ],
                out_specs=pl.BlockSpec((None, 1, HW), lambda i: (i, 0, 0)),
            ),
            compiler_params=pltpu.CompilerParams(
                dimension_semantics=("parallel",),
                vmem_limit_bytes=limit),
        )(bt, x1f, x2f)
    else:
        # ---- Path B ---------------------------------------------------------
        per_plane = 44 * HW * 4           # z/t/tt/b + ssim temps + 2x2 input bufs
        kw0 = max(1, 256 // W)
        kh0 = max(1, 256 // H)
        sep_fixed = 2 * ((kw0 * W) ** 2 + (kh0 * H) ** 2) * 4
        cap = max(1, (budget - sep_fixed) // per_plane)
        tb = max(1, min(P, cap))

        # Packing factors must divide the stacked row counts.
        kw = kw0
        while kw > 1 and (5 * tb * H) % kw != 0:
            kw -= 1
        kh = kh0
        while kh > 1 and (5 * tb * W) % kh != 0:
            kh -= 1

        G = pl.cdiv(P, tb)
        P_pad = G * tb
        x1p = x1.reshape(P, H, W)
        x2p = x2.reshape(P, H, W)
        if P_pad != P:
            x1p = jnp.pad(x1p, ((0, P_pad - P), (0, 0), (0, 0)))
            x2p = jnp.pad(x2p, ((0, P_pad - P), (0, 0), (0, 0)))

        aw = jnp.kron(jnp.eye(kw, dtype=jnp.float32), mw.T)   # (kw*W, kw*W)
        ah = jnp.kron(jnp.eye(kh, dtype=jnp.float32), mh.T)   # (kh*H, kh*H)

        kernel = functools.partial(_ssim_kernel_separable,
                                   tb=tb, H=H, W=W, kw=kw, kh=kh)
        partials = pl.pallas_call(
            kernel,
            out_shape=jax.ShapeDtypeStruct((G, W, H), jnp.float32),
            grid_spec=pltpu.PrefetchScalarGridSpec(
                num_scalar_prefetch=0,
                grid=(G,),
                in_specs=[
                    pl.BlockSpec((kw * W, kw * W), lambda i: (0, 0)),
                    pl.BlockSpec((kh * H, kh * H), lambda i: (0, 0)),
                    pl.BlockSpec((tb, H, W), lambda i: (i, 0, 0)),
                    pl.BlockSpec((tb, H, W), lambda i: (i, 0, 0)),
                ],
                out_specs=pl.BlockSpec((None, W, H), lambda i: (i, 0, 0)),
            ),
            compiler_params=pltpu.CompilerParams(
                dimension_semantics=("parallel",),
                vmem_limit_bytes=limit),
        )(aw, ah, x1p, x2p)

    # Padded zero planes produce ssim == 1 bit-exactly (identical planes =>
    # num == den), so correct the sum in the wrapper instead of masking.
    total = jnp.sum(partials) - jnp.float32((P_pad - P) * HW)
    return 1.0 - total / jnp.float32(P * HW)


def ssim_loss_ref(img1, img2):
    """Pure-JAX reference mirroring the PyTorch module."""
    img1 = jnp.clip((img1 + 1.0) / 2.0, 0.0, 1.0)
    img2 = jnp.clip((img2 + 1.0) / 2.0, 0.0, 1.0)
    N, C, H, W = img1.shape
    g = gaussian_1d(WINDOW_SIZE, SIGMA)
    w2d = jnp.outer(g, g)
    kern = jnp.broadcast_to(w2d, (C, 1, WINDOW_SIZE, WINDOW_SIZE)).astype(jnp.float32)
    pad = WINDOW_SIZE // 2

    def conv(x):
        return jax.lax.conv_general_dilated(
            x, kern, window_strides=(1, 1),
            padding=[(pad, pad), (pad, pad)],
            feature_group_count=C,
            dimension_numbers=("NCHW", "OIHW", "NCHW"))

    mu1, mu2 = conv(img1), conv(img2)
    mu1_sq, mu2_sq, mu1_mu2 = mu1 * mu1, mu2 * mu2, mu1 * mu2
    s1 = conv(img1 * img1) - mu1_sq
    s2 = conv(img2 * img2) - mu2_sq
    s12 = conv(img1 * img2) - mu1_mu2
    ssim_map = ((2 * mu1_mu2 + C1) * (2 * s12 + C2)) / (
        (mu1_sq + mu2_sq + C1) * (s1 + s2 + C2))
    return 1.0 - jnp.mean(ssim_map)


if __name__ == "__main__":
    key = jax.random.PRNGKey(0)
    k1, k2 = jax.random.split(key)
    N, C, H, W = 2, 4, 16, 16
    img1 = jax.random.uniform(k1, (N, C, H, W), jnp.float32, -1.0, 1.0)
    img2 = jax.random.uniform(k2, (N, C, H, W), jnp.float32, -1.0, 1.0)

    out = jax.block_until_ready(ssim_loss_pallas(img1, img2))
    ref = jax.block_until_ready(ssim_loss_ref(img1, img2))

    assert jnp.allclose(out, ref, rtol=1e-4, atol=1e-5), (out, ref)
    print("KERNEL_OK")
</pallas_src>

<mosaic_0001>
module attributes {stable_mosaic.version = 11 : i64} {
  func.func @_ssim_kernel_fused(%arg0: i32, %arg1: memref<256x256xf32, #tpu.memory_space<vmem>>, %arg2: memref<8x256xf32, #tpu.memory_space<vmem>>, %arg3: memref<8x256xf32, #tpu.memory_space<vmem>>, %arg4: memref<1x1x256xf32, #tpu.memory_space<vmem>>) attributes {dimension_semantics = [#tpu.dimension_semantics<parallel>], iteration_bounds = array<i64: 1>, scalar_prefetch = 0 : i64, scratch_operands = 0 : i64, tpu.core_type = #tpu.core_type<tc>, window_params = [{pipeline_mode = #tpu.pipeline_mode<synchronous>, transform_indices = @transform_0, window_bounds = array<i64: 256, 256>}, {transform_indices = @transform_1, window_bounds = array<i64: 8, 256>}, {transform_indices = @transform_2, window_bounds = array<i64: 8, 256>}, {transform_indices = @transform_3, window_bounds = array<i64: 1, 1, 256>}]} {
    %c0 = arith.constant 0 : index
    %c0_0 = arith.constant 0 : index
    %0 = vector.load %arg2[%c0, %c0_0] : memref<8x256xf32, #tpu.memory_space<vmem>>, vector<8x256xf32>
    %cst = arith.constant 1.000000e+00 : f32
    %1 = vector.broadcast %cst : f32 to vector<8x256xf32>
    %2 = arith.addf %0, %1 : vector<8x256xf32>
    %cst_1 = arith.constant 5.000000e-01 : f32
    %3 = vector.broadcast %cst_1 : f32 to vector<8x256xf32>
    %4 = arith.mulf %2, %3 : vector<8x256xf32>
    %cst_2 = arith.constant 0.000000e+00 : f32
    %cst_3 = arith.constant 1.000000e+00 : f32
    %5 = vector.broadcast %cst_2 : f32 to vector<8x256xf32>
    %6 = arith.maximumf %5, %4 : vector<8x256xf32>
    %7 = vector.broadcast %cst_3 : f32 to vector<8x256xf32>
    %8 = arith.minimumf %7, %6 : vector<8x256xf32>
    %c0_4 = arith.constant 0 : index
    %c0_5 = arith.constant 0 : index
    %9 = vector.load %arg3[%c0_4, %c0_5] : memref<8x256xf32, #tpu.memory_space<vmem>>, vector<8x256xf32>
    %cst_6 = arith.constant 1.000000e+00 : f32
    %10 = vector.broadcast %cst_6 : f32 to vector<8x256xf32>
    %11 = arith.addf %9, %10 : vector<8x256xf32>
    %cst_7 = arith.constant 5.000000e-01 : f32
    %12 = vector.broadcast %cst_7 : f32 to vector<8x256xf32>
    %13 = arith.mulf %11, %12 : vector<8x256xf32>
    %cst_8 = arith.constant 0.000000e+00 : f32
    %cst_9 = arith.constant 1.000000e+00 : f32
    %14 = vector.broadcast %cst_8 : f32 to vector<8x256xf32>
    %15 = arith.maximumf %14, %13 : vector<8x256xf32>
    %16 = vector.broadcast %cst_9 : f32 to vector<8x256xf32>
    %17 = arith.minimumf %16, %15 : vector<8x256xf32>
    %18 = arith.mulf %8, %8 : vector<8x256xf32>
    %19 = arith.mulf %17, %17 : vector<8x256xf32>
    %20 = arith.mulf %8, %17 : vector<8x256xf32>
    %21 = tpu.concatenate %8, %17, %18, %19, %20 in 0 : vector<8x256xf32>, vector<8x256xf32>, vector<8x256xf32>, vector<8x256xf32>, vector<8x256xf32> -> vector<40x256xf32>
    %c0_10 = arith.constant 0 : index
    %c0_11 = arith.constant 0 : index
    %22 = vector.load %arg1[%c0_10, %c0_11] : memref<256x256xf32, #tpu.memory_space<vmem>>, vector<256x256xf32>
    %cst_12 = arith.constant dense<0.000000e+00> : vector<40x256xf32>
    %23 = tpu.matmul %21, %22, %cst_12 {dimension_numbers = #tpu.dot_dimension_numbers<[1], [0], [0], [1], [0, 0, 1, 1], [], []>} : vector<40x256xf32>, vector<256x256xf32>, vector<40x256xf32> -> vector<40x256xf32>
    %24 = vector.extract_strided_slice %23 {offsets = [0, 0], sizes = [8, 256], strides = [1, 1]} : vector<40x256xf32> to vector<8x256xf32>
    %25 = vector.extract_strided_slice %23 {offsets = [8, 0], sizes = [8, 256], strides = [1, 1]} : vector<40x256xf32> to vector<8x256xf32>
    %26 = vector.extract_strided_slice %23 {offsets = [16, 0], sizes = [8, 256], strides = [1, 1]} : vector<40x256xf32> to vector<8x256xf32>
    %27 = vector.extract_strided_slice %23 {offsets = [24, 0], sizes = [8, 256], strides = [1, 1]} : vector<40x256xf32> to vector<8x256xf32>
    %28 = vector.extract_strided_slice %23 {offsets = [32, 0], sizes = [8, 256], strides = [1, 1]} : vector<40x256xf32> to vector<8x256xf32>
    %29 = arith.mulf %24, %24 : vector<8x256xf32>
    %30 = arith.mulf %25, %25 : vector<8x256xf32>
    %31 = arith.mulf %24, %25 : vector<8x256xf32>
    %32 = arith.subf %26, %29 : vector<8x256xf32>
    %33 = arith.subf %27, %30 : vector<8x256xf32>
    %34 = arith.subf %28, %31 : vector<8x256xf32>
    %cst_13 = arith.constant 2.000000e+00 : f32
    %35 = vector.broadcast %cst_13 : f32 to vector<8x256xf32>
    %36 = arith.mulf %35, %31 : vector<8x256xf32>
    %cst_14 = arith.constant 9.99999974E-5 : f32
    %37 = vector.broadcast %cst_14 : f32 to vector<8x256xf32>
    %38 = arith.addf %36, %37 : vector<8x256xf32>
    %cst_15 = arith.constant 2.000000e+00 : f32
    %39 = vector.broadcast %cst_15 : f32 to vector<8x256xf32>
    %40 = arith.mulf %39, %34 : vector<8x256xf32>
    %cst_16 = arith.constant 8.99999984E-4 : f32
    %41 = vector.broadcast %cst_16 : f32 to vector<8x256xf32>
    %42 = arith.addf %40, %41 : vector<8x256xf32>
    %43 = arith.mulf %38, %42 : vector<8x256xf32>
    %44 = arith.addf %29, %30 : vector<8x256xf32>
    %cst_17 = arith.constant 9.99999974E-5 : f32
    %45 = vector.broadcast %cst_17 : f32 to vector<8x256xf32>
    %46 = arith.addf %44, %45 : vector<8x256xf32>
    %47 = arith.addf %32, %33 : vector<8x256xf32>
    %cst_18 = arith.constant 8.99999984E-4 : f32
    %48 = vector.broadcast %cst_18 : f32 to vector<8x256xf32>
    %49 = arith.addf %47, %48 : vector<8x256xf32>
    %50 = arith.mulf %46, %49 : vector<8x256xf32>
    %51 = arith.divf %43, %50 : vector<8x256xf32>
    %cst_19 = arith.constant dense<0.000000e+00> : vector<256xf32>
    %52 = vector.multi_reduction <add>, %51, %cst_19 [0] : vector<8x256xf32> to vector<256xf32>
    %53 = vector.shape_cast %52 : vector<256xf32> to vector<1x256xf32>
    %c0_20 = arith.constant 0 : index
    %c0_21 = arith.constant 0 : index
    %c0_22 = arith.constant 0 : index
    %54 = vector.load %arg4[%c0_20, %c0_21, %c0_22] : memref<1x1x256xf32, #tpu.memory_space<vmem>>, vector<1x1x256xf32>
    %55 = vector.shape_cast %54 : vector<1x1x256xf32> to vector<1x256xf32>
    %56 = vector.shape_cast %53 : vector<1x256xf32> to vector<1x1x256xf32>
    tpu.vector_store %arg4[%c0_20, %c0_21, %c0_22], %56 {strides = array<i32>} : memref<1x1x256xf32, #tpu.memory_space<vmem>>, vector<1x1x256xf32>,
    return
  }
  func.func @transform_0(%arg0: i32) -> (i32, i32) {
    %c0_i32 = arith.constant 0 : i32
    %c0_i32_0 = arith.constant 0 : i32
    %c0_i32_1 = arith.constant 0 : i32
    return %c0_i32, %c0_i32_0 : i32, i32
  }
  func.func @transform_1(%arg0: i32) -> (i32, i32) {
    %c0_i32 = arith.constant 0 : i32
    %c0_i32_0 = arith.constant 0 : i32
    return %arg0, %c0_i32 : i32, i32
  }
  func.func @transform_2(%arg0: i32) -> (i32, i32) {
    %c0_i32 = arith.constant 0 : i32
    %c0_i32_0 = arith.constant 0 : i32
    return %arg0, %c0_i32 : i32, i32
  }
  func.func @transform_3(%arg0: i32) -> (i32, i32, i32) {
    %c0_i32 = arith.constant 0 : i32
    %c0_i32_0 = arith.constant 0 : i32
    %c0_i32_1 = arith.constant 0 : i32
    return %arg0, %c0_i32, %c0_i32_0 : i32, i32, i32
  }
}

</mosaic_0001>

<llo_original>
// kernel: tpu_custom_call.1
$region0: #{tpu_custom_call.1}
  #allocation0 [shape = 'u32[]', space=smem, size = 0x4, offset = 0x4, fixed_abs, tag = 'smem constant byte address 0x4 - core index']
  #allocation1 [shape = 'u32[144,128]{1,0:T(1,128)}', space=vmem, size = 0x12000, scoped, tag = 'internal scratch']
  %s0 = inlined_call_operand.hbm [shape: f32[256,256], index: 0, kind: input, shape index: {}]
  %s1 = inlined_call_operand.hbm [shape: f32[8,256], index: 1, kind: input, shape index: {}]
  %s2 = inlined_call_operand.hbm [shape: f32[8,256], index: 2, kind: input, shape index: {}]
  %s3 = inlined_call_operand.hbm [shape: f32[1,1,256], index: 3, kind: output, shape index: {}]
  %s4 = sld [smem:[#allocation0]]
  $region34: #{tpu_custom_call.1} parent=0
    _
  %s6 = ssub.s32 1, %s4
  %s7 = scalar_select 0, %s6, %s4
  $region1: #{tpu_custom_call.1} parent=0
    #allocation2 [shape = 'u8[262144]{0}', space=vmem, size = 0x40000, scoped, tag = 'input window, operand 0, single buffered']
    #allocation3 [shape = 's32[1]{0}', space=sflag, size = 0x4, scoped, tag = 'scoped memory for tpu_custom_call.1']
    #allocation4 [shape = 's32[1]{0}', space=sflag, size = 0x4, scoped, tag = 'scoped memory for tpu_custom_call.1']
    #allocation5 [shape = 'u8[8192]{0}', space=vmem, size = 0x2000, scoped, tag = 'input window, operand 1, single buffered']
    #allocation6 [shape = 's32[1]{0}', space=sflag, size = 0x4, scoped, tag = 'scoped memory for tpu_custom_call.1']
    #allocation7 [shape = 'u8[8192]{0}', space=vmem, size = 0x2000, scoped, tag = 'input window, operand 2, single buffered']
    #allocation8 [shape = 'u8[1024]{0}', space=vmem, size = 0x400, scoped, tag = 'output window, operand 0, single buffered']
    %8 = vsyncpa [#allocation3], 0
    %9 = vsyncpa [#allocation6], 0
    %10 = vsyncpa [#allocation4], 0
    // Predicated region
    $region2: #{tpu_custom_call.1} parent=1 // pred_check
      _
    $region3: #{tpu_custom_call.1} parent=1 // pred_check_branch
      %12 = sbr.rel (0) target = $region5
    $region4: #{tpu_custom_call.1} parent=1 // pred_region
      %s14 = ssub.s32 8192, 8192
      %15 = vsyncadd [#allocation3], %s14
      %s16 = sshll.u32 [#allocation2], 4
      %s17 = int_to_ptr.vmem [resolvable:$true] %s16
      %22 = dma.hbm_to_vmem [thread:$0]  %s0, 8192, %s17, [#allocation3], 256, 256, 16
    $region5: #{tpu_custom_call.1} parent=1 // pred_fallthru
      _
    // Predicated region
    $region6: #{tpu_custom_call.1} parent=1 // pred_check
      _
    $region7: #{tpu_custom_call.1} parent=1 // pred_check_branch
      %24 = sbr.rel (0) target = $region9
    $region8: #{tpu_custom_call.1} parent=1 // pred_region
      %s26 = ssub.s32 256, 256
      %27 = vsyncadd [#allocation6], %s26
      %s29 = sshll.u32 [#allocation5], 4
      %s30 = int_to_ptr.vmem [resolvable:$true] %s29
      %32 = dma.hbm_to_vmem [thread:$0]  %s1, 256, %s30, [#allocation6]
    $region9: #{tpu_custom_call.1} parent=1 // pred_fallthru
      _
    // Predicated region
    $region10: #{tpu_custom_call.1} parent=1 // pred_check
      _
    $region11: #{tpu_custom_call.1} parent=1 // pred_check_branch
      %34 = sbr.rel (0) target = $region13
    $region12: #{tpu_custom_call.1} parent=1 // pred_region
      %s36 = ssub.s32 256, 256
      %37 = vsyncadd [#allocation6], %s36
      %s39 = sshll.u32 [#allocation7], 4
      %s40 = int_to_ptr.vmem [resolvable:$true] %s39
      %42 = dma.hbm_to_vmem [thread:$0]  %s2, 256, %s40, [#allocation6]
    $region13: #{tpu_custom_call.1} parent=1 // pred_fallthru
      _
    // Predicated region
    $region14: #{tpu_custom_call.1} parent=1 // pred_check
      _
    $region15: #{tpu_custom_call.1} parent=1 // pred_check_branch
      %44 = sbr.rel (0) target = $region17
    $region16: #{tpu_custom_call.1} parent=1 // pred_region
      %45 = dma.done [#allocation3], 8192
    $region17: #{tpu_custom_call.1} parent=1 // pred_fallthru
      _
    // Predicated region
    $region18: #{tpu_custom_call.1} parent=1 // pred_check
      _
    $region19: #{tpu_custom_call.1} parent=1 // pred_check_branch
      %47 = sbr.rel (0) target = $region21
    $region20: #{tpu_custom_call.1} parent=1 // pred_region
      %48 = dma.done [#allocation6], 256
    $region21: #{tpu_custom_call.1} parent=1 // pred_fallthru
      _
    // Predicated region
    $region22: #{tpu_custom_call.1} parent=1 // pred_check
      _
    $region23: #{tpu_custom_call.1} parent=1 // pred_check_branch
      %50 = sbr.rel (0) target = $region25
    $region24: #{tpu_custom_call.1} parent=1 // pred_region
      %51 = dma.done [#allocation6], 256
    $region25: #{tpu_custom_call.1} parent=1 // pred_fallthru
      _
    %v52 = vld [vmem:[#allocation5] sm:$0xff]
    %v53 = vld [vmem:[#allocation5 + $0x8] sm:$0xff]
    %v54 = vadd.f32 %v52, 1.0
    %v55 = vadd.f32 %v53, 1.0
    %v56 = vmul.f32 %v54, 0.5
    %v57 = vmul.f32 %v55, 0.5
    %v58 = vmax.f32 %v56, 0.0
    %v59 = vmax.f32 %v57, 0.0
    %v60 = vmin.f32 %v58, 1.0
    %v61 = vmin.f32 %v59, 1.0
    %v62 = vld [vmem:[#allocation7] sm:$0xff]
    %v63 = vld [vmem:[#allocation7 + $0x8] sm:$0xff]
    %v64 = vadd.f32 %v62, 1.0
    %v65 = vadd.f32 %v63, 1.0
    %v66 = vmul.f32 %v64, 0.5
    %v67 = vmul.f32 %v65, 0.5
    %v68 = vmax.f32 %v66, 0.0
    %v69 = vmax.f32 %v67, 0.0
    %v70 = vmin.f32 %v68, 1.0
    %v71 = vmin.f32 %v69, 1.0
    %v72 = vmul.f32 %v60, %v60
    %v73 = vmul.f32 %v61, %v61
    %v74 = vmul.f32 %v70, %v70
    %v75 = vmul.f32 %v71, %v71
    %v76 = vmul.f32 %v60, %v70
    %v77 = vmul.f32 %v61, %v71
    %v78 = vld [vmem:[#allocation2] sm:$0xff]
    %v79 = vld [vmem:[#allocation2 + $0x8] sm:$0xff]
    %v80 = vld [vmem:[#allocation2 + $0x10] sm:$0xff]
    %v81 = vld [vmem:[#allocation2 + $0x18] sm:$0xff]
    %v82 = vld [vmem:[#allocation2 + $0x20] sm:$0xff]
    %v83 = vld [vmem:[#allocation2 + $0x28] sm:$0xff]
    %v84 = vld [vmem:[#allocation2 + $0x30] sm:$0xff]
    %v85 = vld [vmem:[#allocation2 + $0x38] sm:$0xff]
    %v86 = vld [vmem:[#allocation2 + $0x40] sm:$0xff]
    %v87 = vld [vmem:[#allocation2 + $0x48] sm:$0xff]
    %v88 = vld [vmem:[#allocation2 + $0x50] sm:$0xff]
    %v89 = vld [vmem:[#allocation2 + $0x58] sm:$0xff]
    %v90 = vld [vmem:[#allocation2 + $0x60] sm:$0xff]
    %v91 = vld [vmem:[#allocation2 + $0x68] sm:$0xff]
    %v92 = vld [vmem:[#allocation2 + $0x70] sm:$0xff]
    %v93 = vld [vmem:[#allocation2 + $0x78] sm:$0xff]
    %v94 = vld [vmem:[#allocation2 + $0x80] sm:$0xff]
    %v95 = vld [vmem:[#allocation2 + $0x88] sm:$0xff]
    %v96 = vld [vmem:[#allocation2 + $0x90] sm:$0xff]
    %v97 = vld [vmem:[#allocation2 + $0x98] sm:$0xff]
    %v98 = vld [vmem:[#allocation2 + $0xa0] sm:$0xff]
    %v99 = vld [vmem:[#allocation2 + $0xa8] sm:$0xff]
    %v100 = vld [vmem:[#allocation2 + $0xb0] sm:$0xff]
    %v101 = vld [vmem:[#allocation2 + $0xb8] sm:$0xff]
    %v102 = vld [vmem:[#allocation2 + $0xc0] sm:$0xff]
    %v103 = vld [vmem:[#allocation2 + $0xc8] sm:$0xff]
    %v104 = vld [vmem:[#allocation2 + $0xd0] sm:$0xff]
    %v105 = vld [vmem:[#allocation2 + $0xd8] sm:$0xff]
    %v106 = vld [vmem:[#allocation2 + $0xe0] sm:$0xff]
    %v107 = vld [vmem:[#allocation2 + $0xe8] sm:$0xff]
    %v108 = vld [vmem:[#allocation2 + $0xf0] sm:$0xff]
    %v109 = vld [vmem:[#allocation2 + $0xf8] sm:$0xff]
    %v110 = vld [vmem:[#allocation2 + $0x100] sm:$0xff]
    %v111 = vld [vmem:[#allocation2 + $0x108] sm:$0xff]
    %v112 = vld [vmem:[#allocation2 + $0x110] sm:$0xff]
    %v113 = vld [vmem:[#allocation2 + $0x118] sm:$0xff]
    %v114 = vld [vmem:[#allocation2 + $0x120] sm:$0xff]
    %v115 = vld [vmem:[#allocation2 + $0x128] sm:$0xff]
    %v116 = vld [vmem:[#allocation2 + $0x130] sm:$0xff]
    %v117 = vld [vmem:[#allocation2 + $0x138] sm:$0xff]
    %v118 = vld [vmem:[#allocation2 + $0x140] sm:$0xff]
    %v119 = vld [vmem:[#allocation2 + $0x148] sm:$0xff]
    %v120 = vld [vmem:[#allocation2 + $0x150] sm:$0xff]
    %v121 = vld [vmem:[#allocation2 + $0x158] sm:$0xff]
    %v122 = vld [vmem:[#allocation2 + $0x160] sm:$0xff]
    %v123 = vld [vmem:[#allocation2 + $0x168] sm:$0xff]
    %v124 = vld [vmem:[#allocation2 + $0x170] sm:$0xff]
    %v125 = vld [vmem:[#allocation2 + $0x178] sm:$0xff]
    %v126 = vld [vmem:[#allocation2 + $0x180] sm:$0xff]
    %v127 = vld [vmem:[#allocation2 + $0x188] sm:$0xff]
    %v128 = vld [vmem:[#allocation2 + $0x190] sm:$0xff]
    %v129 = vld [vmem:[#allocation2 + $0x198] sm:$0xff]
    %v130 = vld [vmem:[#allocation2 + $0x1a0] sm:$0xff]
    %v131 = vld [vmem:[#allocation2 + $0x1a8] sm:$0xff]
    %v132 = vld [vmem:[#allocation2 + $0x1b0] sm:$0xff]
    %v133 = vld [vmem:[#allocation2 + $0x1b8] sm:$0xff]
    %v134 = vld [vmem:[#allocation2 + $0x1c0] sm:$0xff]
    %v135 = vld [vmem:[#allocation2 + $0x1c8] sm:$0xff]
    %v136 = vld [vmem:[#allocation2 + $0x1d0] sm:$0xff]
    %v137 = vld [vmem:[#allocation2 + $0x1d8] sm:$0xff]
    %v138 = vld [vmem:[#allocation2 + $0x1e0] sm:$0xff]
    %v139 = vld [vmem:[#allocation2 + $0x1e8] sm:$0xff]
    %v140 = vld [vmem:[#allocation2 + $0x1f0] sm:$0xff]
    %v141 = vld [vmem:[#allocation2 + $0x1f8] sm:$0xff]
    %142 = vmatprep.subr.mxu0 %v109
    %143 = vmatpush1.msra.mxu0 %v108
    %144 = vmatprep.subr.mxu0 %v107
    %145 = vmatpush1.msra.mxu0 %v106
    %146 = vmatprep.subr.mxu0 %v105
    %147 = vmatpush1.msra.mxu0 %v104
    %148 = vmatprep.subr.mxu0 %v103
    %149 = vmatpush1.msra.mxu0 %v102
    %150 = vmatprep.subr.mxu0 %v101
    %151 = vmatpush1.msra.mxu0 %v100
    %152 = vmatprep.subr.mxu0 %v99
    %153 = vmatpush1.msra.mxu0 %v98
    %154 = vmatprep.subr.mxu0 %v97
    %155 = vmatpush1.msra.mxu0 %v96
    %156 = vmatprep.subr.mxu0 %v95
    %157 = vmatpush1.msra.mxu0 %v94
    %158 = vmatprep.subr.mxu0 %v93
    %159 = vmatpush1.msra.mxu0 %v92
    %160 = vmatprep.subr.mxu0 %v91
    %161 = vmatpush1.msra.mxu0 %v90
    %162 = vmatprep.subr.mxu0 %v89
    %163 = vmatpush1.msra.mxu0 %v88
    %164 = vmatprep.subr.mxu0 %v87
    %165 = vmatpush1.msra.mxu0 %v86
    %166 = vmatprep.subr.mxu0 %v85
    %167 = vmatpush1.msra.mxu0 %v84
    %168 = vmatprep.subr.mxu0 %v83
    %169 = vmatpush1.msra.mxu0 %v82
    %170 = vmatprep.subr.mxu0 %v81
    %171 = vmatpush1.msra.mxu0 %v80
    %172 = vmatprep.subr.mxu0 %v79
    %173 = vmatpush1.msra.mxu0 %v78
    %174 = vmatprep.subr.mxu0 %v141
    %175 = vmatpush2.msra.mxu0 %v140
    %176 = vmatprep.subr.mxu0 %v139
    %177 = vmatpush2.msra.mxu0 %v138
    %178 = vmatprep.subr.mxu0 %v137
    %179 = vmatpush2.msra.mxu0 %v136
    %180 = vmatprep.subr.mxu0 %v135
    %181 = vmatpush2.msra.mxu0 %v134
    %182 = vmatprep.subr.mxu0 %v133
    %183 = vmatpush2.msra.mxu0 %v132
    %184 = vmatprep.subr.mxu0 %v131
    %185 = vmatpush2.msra.mxu0 %v130
    %186 = vmatprep.subr.mxu0 %v129
    %187 = vmatpush2.msra.mxu0 %v128
    %188 = vmatprep.subr.mxu0 %v127
    %189 = vmatpush2.msra.mxu0 %v126
    %190 = vmatprep.subr.mxu0 %v125
    %191 = vmatpush2.msra.mxu0 %v124
    %192 = vmatprep.subr.mxu0 %v123
    %193 = vmatpush2.msra.mxu0 %v122
    %194 = vmatprep.subr.mxu0 %v121
    %195 = vmatpush2.msra.mxu0 %v120
    %196 = vmatprep.subr.mxu0 %v119
    %197 = vmatpush2.msra.mxu0 %v118
    %198 = vmatprep.subr.mxu0 %v117
    %199 = vmatpush2.msra.mxu0 %v116
    %200 = vmatprep.subr.mxu0 %v115
    %201 = vmatpush2.msra.mxu0 %v114
    %202 = vmatprep.subr.mxu0 %v113
    %203 = vmatpush2.msra.mxu0 %v112
    %204 = vmatprep.subr.mxu0 %v111
    %205 = vmatpush2.msra.mxu0 %v110
    %206 = vmatprep.mubr.f32.mxu0 %v61
    %207 = vmatmul.mubr.f32.gmra.mxu0 %v60
    %v208 = vpop.f32.mrf.mxu0
    %v209 = vadd.f32 0.0, %v208
    %v210 = vpop.f32.mrf.mxu0
    %v211 = vadd.f32 0.0, %v210
    %212 = vmatprep.mubr.f32.mxu0 %v71
    %213 = vmatmul.mubr.f32.gmra.mxu0 %v70
    %v214 = vpop.f32.mrf.mxu0
    %v215 = vadd.f32 0.0, %v214
    %v216 = vpop.f32.mrf.mxu0
    %v217 = vadd.f32 0.0, %v216
    %218 = vmatprep.mubr.f32.mxu0 %v73
    %219 = vmatmul.mubr.f32.gmra.mxu0 %v72
    %v220 = vpop.f32.mrf.mxu0
    %v221 = vadd.f32 0.0, %v220
    %v222 = vpop.f32.mrf.mxu0
    %v223 = vadd.f32 0.0, %v222
    %224 = vmatprep.mubr.f32.mxu0 %v75
    %225 = vmatmul.mubr.f32.gmra.mxu0 %v74
    %v226 = vpop.f32.mrf.mxu0
    %v227 = vadd.f32 0.0, %v226
    %v228 = vpop.f32.mrf.mxu0
    %v229 = vadd.f32 0.0, %v228
    %230 = vmatprep.mubr.f32.mxu0 %v77
    %231 = vmatmul.mubr.f32.gmra.mxu0 %v76
    %v232 = vpop.f32.mrf.mxu0
    %v233 = vadd.f32 0.0, %v232
    %v234 = vpop.f32.mrf.mxu0
    %v235 = vadd.f32 0.0, %v234
    %236 = vdwg.mxu0
    %v237 = vmul.f32 %v209, %v209
    %v238 = vmul.f32 %v211, %v211
    %v239 = vmul.f32 %v215, %v215
    %v240 = vmul.f32 %v217, %v217
    %v241 = vmul.f32 %v209, %v215
    %v242 = vmul.f32 %v211, %v217
    %v243 = vsub.f32 %v221, %v237
    %v244 = vsub.f32 %v223, %v238
    %v245 = vsub.f32 %v227, %v239
    %v246 = vsub.f32 %v229, %v240
    %v247 = vsub.f32 %v233, %v241
    %v248 = vsub.f32 %v235, %v242
    %v249 = vmul.f32 %v241, 2.0
    %v250 = vmul.f32 %v242, 2.0
    %v251 = vadd.f32 %v249, 0.0001
    %v252 = vadd.f32 %v250, 0.0001
    %v253 = vmul.f32 %v247, 2.0
    %v254 = vmul.f32 %v248, 2.0
    %v255 = vadd.f32 %v253, 0.0009
    %v256 = vadd.f32 %v254, 0.0009
    %v257 = vmul.f32 %v251, %v255
    %v258 = vmul.f32 %v252, %v256
    %v259 = vadd.f32 %v237, %v239
    %v260 = vadd.f32 %v238, %v240
    %v261 = vadd.f32 %v259, 0.0001
    %v262 = vadd.f32 %v260, 0.0001
    %v263 = vadd.f32 %v243, %v245
    %v264 = vadd.f32 %v244, %v246
    %v265 = vadd.f32 %v263, 0.0009
    %v266 = vadd.f32 %v264, 0.0009
    %v267 = vmul.f32 %v261, %v265
    %v268 = vmul.f32 %v262, %v266
    %v269 = vrcp.pop %v267
    %v270 = vmul.f32 %v257, %v269
    %v271 = vrcp.pop %v268
    %v272 = vmul.f32 %v258, %v271
    %v273 = vrot.slane %v270, 4
    %v274 = vadd.f32 %v270, %v273
    %v275 = vrot.slane %v274, 2
    %v276 = vadd.f32 %v274, %v275
    %v277 = vrot.slane %v276, 1
    %v278 = vadd.f32 %v276, %v277
    %v279 = vrot.slane %v272, 4
    %v280 = vadd.f32 %v272, %v279
    %v281 = vrot.slane %v280, 2
    %v282 = vadd.f32 %v280, %v281
    %v283 = vrot.slane %v282, 1
    %v284 = vadd.f32 %v282, %v283
    %v287 = vcombine.low %v278, %v284
    %v289 = vunpack.c.l.s4 1966171168
    %v290 = vunpack.c.0.s8 %v289
    %v291 = vlaneseq
    %v292 = vshrl.u32 %v291, 7
    %v293 = vsub.s32 %v290, %v292
    %v294 = vrot.slane %v287, %v293
    %v296 = vunpack.c.l.s4 1966171168
    %v297 = vunpack.c.0.s8 %v296
    %v298 = vlaneseq
    %v299 = vshrl.u32 %v298, 7
    %v300 = vsub.s32 %v297, %v299
    %v301 = vrot.slane %v294, %v300
    %v303 = vlaneseq
    %vm304 = vcmp.ge.s32.totalorder %v303, 0
    %vm305 = vcmp.lt.s32.totalorder %v303, 256
    %vm306 = vmand %vm304, %vm305
    %307 = vst.msk [vmem:[#allocation8] sm:$0x3] %vm306, %v301
    // Predicated region
    $region26: #{tpu_custom_call.1} parent=1 // pred_check
      _
    $region27: #{tpu_custom_call.1} parent=1 // pred_check_branch
      %309 = sbr.rel (0) target = $region29
    $region28: #{tpu_custom_call.1} parent=1 // pred_region
      %s311 = ssub.s32 32, 32
      %312 = vsyncadd [#allocation4], %s311
      %s314 = sshll.u32 [#allocation8], 4
      %s315 = int_to_ptr.vmem [resolvable:$true] %s314
      %317 = dma.vmem_to_hbm [thread:$0]  %s315, 32, %s3, [#allocation4]
    $region29: #{tpu_custom_call.1} parent=1 // pred_fallthru
      _
    // Predicated region
    $region30: #{tpu_custom_call.1} parent=1 // pred_check
      _
    $region31: #{tpu_custom_call.1} parent=1 // pred_check_branch
      %319 = sbr.rel (0) target = $region33
    $region32: #{tpu_custom_call.1} parent=1 // pred_region
      %320 = dma.done [#allocation4], 32
    $region33: #{tpu_custom_call.1} parent=1 // pred_fallthru
      _
    %321 = vsyncpa [#allocation3], 1
    %322 = vsyncpa [#allocation6], 1
    %323 = vsyncpa [#allocation4], 1

</llo_original>
